<compile_context>
chip_gen: v5e
topology: v5e:2x2
jax: 0.10.0
libtpu: 0.0.40
codegen_flags: <defaults>
</compile_context>

<pallas_src>
import math

import jax
import jax.numpy as jnp
from jax.experimental import pallas as pl
from jax.experimental.pallas import tpu as pltpu

_LANE = 128


# ----------------------------- kernel -----------------------------

def _make_lora_kernel(alpha):
    """alpha is a static Python float (matches the PyTorch module attribute)."""

    def kernel(x_ref, a_ref, b_ref, o_ref, h_acc):
        # x_ref: (TM, TK)   a_ref: (TK, rank)   b_ref: (rank, out_dim)
        # o_ref: (TM, out_dim)   h_acc: (TM, rank) f32 scratch (reduction accumulator)
        k = pl.program_id(1)

        @pl.when(k == 0)
        def _():
            h_acc[...] = jnp.zeros_like(h_acc)

        h_acc[...] += jnp.dot(
            x_ref[...], a_ref[...], preferred_element_type=jnp.float32
        )

        @pl.when(k == pl.num_programs(1) - 1)
        def _():
            # Apply alpha on the lane-sparse (TM, rank) intermediate, not on the
            # (TM, out_dim) result: ~out_dim/rank fewer VPU multiplies.
            h_scaled = (alpha * h_acc[...]).astype(b_ref.dtype)
            y = jnp.dot(h_scaled, b_ref[...], preferred_element_type=jnp.float32)
            o_ref[...] = y.astype(o_ref.dtype)

    return kernel


# ----------------------------- tiling heuristics -----------------------------

def _round_up(x, m):
    return ((x + m - 1) // m) * m


def _choose_tiles(M, in_dim, out_dim, rank, itemsize, block_rows, budget_bytes):
    """Pick (TM, TK) that fit the VMEM budget on all TPU generations."""
    sublane = {4: 8, 2: 16, 1: 32}[itemsize]

    # Row tile: as large as allowed, multiple of the dtype's sublane packing.
    TM = min(_round_up(block_rows, sublane), _round_up(max(M, 1), sublane))
    if M >= 2 * sublane:
        # Keep >= 2 row blocks so the "parallel" axis can feed both v7x
        # TensorCores; near-neutral on single-TC v5e/v6e.
        TM = min(TM, _round_up(pl.cdiv(M, 2), sublane))
    TM = max(TM, sublane)

    def vmem_bytes(tm, tk):
        # double-buffered x, out, A, B tiles + f32 h accumulator scratch
        return (2 * tm * tk + 2 * tm * out_dim + 2 * tk * rank
                + 2 * rank * out_dim) * itemsize + tm * rank * 4

    # Reduction tile over in_dim: full in_dim if it fits, otherwise the largest
    # lane-aligned tile that exactly divides in_dim (a partial K tile would
    # pollute the accumulator, so exact division is required).
    TK = in_dim
    if vmem_bytes(TM, TK) > budget_bytes:
        for cand in range((in_dim // _LANE) * _LANE, 0, -_LANE):
            if in_dim % cand == 0 and vmem_bytes(TM, cand) <= budget_bytes:
                TK = cand
                break
    # If still over budget, shrink the row tile.
    while vmem_bytes(TM, TK) > budget_bytes and TM > sublane:
        TM = max(sublane, _round_up(TM // 2, sublane))

    return TM, TK


# ----------------------------- wrapper -----------------------------

def lora_pallas(x, A, B, alpha, *, block_rows=512, compute_dtype=None,
                vmem_budget_bytes=36 * 1024 * 1024):
    """LoRA forward: alpha * (x @ A @ B).

    x: (..., in_dim); A: (in_dim, rank); B: (rank, out_dim).
    compute_dtype: optionally cast x/A/B (e.g. jnp.bfloat16 to halve HBM bytes);
    accumulation stays f32 either way.
    """
    *lead, in_dim = x.shape
    in_dim_a, rank = A.shape
    rank_b, out_dim = B.shape
    assert in_dim_a == in_dim and rank_b == rank, (A.shape, B.shape, in_dim)

    if compute_dtype is not None:
        x = x.astype(compute_dtype)
        A = A.astype(compute_dtype)
        B = B.astype(compute_dtype)
    dtype = x.dtype
    itemsize = jnp.dtype(dtype).itemsize

    # Fold all leading (batch/seq/...) dims into one row dimension M.
    M = int(math.prod(lead)) if lead else 1
    x2 = x.reshape(M, in_dim)

    TM, TK = _choose_tiles(M, in_dim, out_dim, rank, itemsize,
                           block_rows, vmem_budget_bytes)

    # No wrapper-side pad / slice: Pallas masks the partial last row block.
    grid = (pl.cdiv(M, TM), pl.cdiv(in_dim, TK))

    cost = pl.CostEstimate(
        flops=2 * M * (in_dim * rank + rank * out_dim),
        transcendentals=0,
        bytes_accessed=(M * in_dim + M * out_dim) * itemsize
        + A.size * A.dtype.itemsize + B.size * B.dtype.itemsize,
    )

    out = pl.pallas_call(
        _make_lora_kernel(float(alpha)),
        out_shape=jax.ShapeDtypeStruct((M, out_dim), dtype),
        grid_spec=pltpu.PrefetchScalarGridSpec(
            num_scalar_prefetch=0,
            grid=grid,
            in_specs=[
                pl.BlockSpec((TM, TK), lambda i, k: (i, k)),       # x row/K tile
                pl.BlockSpec((TK, rank), lambda i, k: (k, 0)),     # A K tile
                pl.BlockSpec((rank, out_dim), lambda i, k: (0, 0)),  # B (resident)
            ],
            out_specs=pl.BlockSpec((TM, out_dim), lambda i, k: (i, 0)),
            scratch_shapes=[pltpu.VMEM((TM, rank), jnp.float32)],   # h accumulator
        ),
        compiler_params=pltpu.CompilerParams(
            # Row tiles independent -> megacore; reduction axis last, arbitrary.
            dimension_semantics=("parallel", "arbitrary"),
            # Above v5e's 16 MiB scoped default, below v7x's 64 MiB physical.
            vmem_limit_bytes=48 * 1024 * 1024,
        ),
        cost_estimate=cost,
    )(x2, A, B)

    return out.reshape(*lead, out_dim)


# ----------------------------- reference (plain JAX) -----------------------------

def lora_ref(x, A, B, alpha):
    return alpha * (x @ A @ B)


# ----------------------------- main -----------------------------

if __name__ == "__main__":
    # Small shapes consistent with the module; in/out dims lane-dense (128).
    batch, seq, in_dim, rank, out_dim = 2, 8, 128, 8, 128
    alpha = 16.0

    key = jax.random.PRNGKey(0)
    kx, ka, kb = jax.random.split(key, 3)

    x = jax.random.normal(kx, (batch, seq, in_dim), jnp.float32)
    # A initialized like the module: randn * 1/sqrt(rank).
    A = jax.random.normal(ka, (in_dim, rank), jnp.float32) / math.sqrt(rank)
    # Module initializes B to zeros (trivial numerics); use non-zero B to
    # exercise the kernel math, and test the zero-init case separately below.
    B = jax.random.normal(kb, (rank, out_dim), jnp.float32) * 0.05

    # f32 path: strict check against the pure-JAX reference.
    out = jax.block_until_ready(lora_pallas(x, A, B, alpha))
    ref = lora_ref(x, A, B, alpha)
    assert out.shape == (batch, seq, out_dim)
    assert jnp.allclose(out, ref, atol=1e-4, rtol=1e-4), "f32 mismatch vs reference"

    # bf16 compute path (halved HBM traffic; the production recommendation).
    out_bf = jax.block_until_ready(
        lora_pallas(x, A, B, alpha, compute_dtype=jnp.bfloat16))
    ref_bf = lora_ref(x.astype(jnp.bfloat16).astype(jnp.float32),
                      A.astype(jnp.bfloat16).astype(jnp.float32),
                      B.astype(jnp.bfloat16).astype(jnp.float32), alpha)
    assert out_bf.dtype == jnp.bfloat16
    assert jnp.allclose(out_bf.astype(jnp.float32), ref_bf, atol=0.5, rtol=0.05), \
        "bf16 mismatch vs bf16-cast reference"

    # Module-faithful init check: B = zeros  =>  output is exactly zero.
    out_zero = jax.block_until_ready(lora_pallas(x, A, jnp.zeros_like(B), alpha))
    assert jnp.max(jnp.abs(out_zero)) == 0.0

    print("KERNEL_OK")
</pallas_src>

<mosaic_0001>
module attributes {stable_mosaic.version = 11 : i64} {
  func.func @kernel(%arg0: i32, %arg1: i32, %arg2: memref<8x128xf32, #tpu.memory_space<vmem>>, %arg3: memref<128x8xf32, #tpu.memory_space<vmem>>, %arg4: memref<8x128xf32, #tpu.memory_space<vmem>>, %arg5: memref<8x128xf32, #tpu.memory_space<vmem>>, %arg6: memref<8x8xf32, #tpu.memory_space<vmem>>) attributes {dimension_semantics = [#tpu.dimension_semantics<parallel>, #tpu.dimension_semantics<arbitrary>], iteration_bounds = array<i64: 2, 1>, scalar_prefetch = 0 : i64, scratch_operands = 1 : i64, tpu.core_type = #tpu.core_type<tc>, window_params = [{transform_indices = @transform_0, window_bounds = array<i64: 8, 128>}, {transform_indices = @transform_1, window_bounds = array<i64: 128, 8>}, {pipeline_mode = #tpu.pipeline_mode<synchronous>, transform_indices = @transform_2, window_bounds = array<i64: 8, 128>}, {transform_indices = @transform_3, window_bounds = array<i64: 8, 128>}]} {
    %c0_i32 = arith.constant 0 : i32
    %0 = arith.cmpi eq, %arg1, %c0_i32 : i32
    %1 = arith.extui %0 : i1 to i32
    %c0_i32_0 = arith.constant 0 : i32
    %2 = arith.cmpi ne, %1, %c0_i32_0 : i32
    scf.if %2 {
      %cst_10 = arith.constant 0.000000e+00 : f32
      %12 = vector.broadcast %cst_10 : f32 to vector<8x8xf32>
      %c0_11 = arith.constant 0 : index
      %c0_12 = arith.constant 0 : index
      %13 = vector.load %arg6[%c0_11, %c0_12] : memref<8x8xf32, #tpu.memory_space<vmem>>, vector<8x8xf32>
      tpu.vector_store %arg6[%c0_11, %c0_12], %12 {strides = array<i32>} : memref<8x8xf32, #tpu.memory_space<vmem>>, vector<8x8xf32>,
    } else {
    }
    %c0 = arith.constant 0 : index
    %c0_1 = arith.constant 0 : index
    %3 = vector.load %arg6[%c0, %c0_1] : memref<8x8xf32, #tpu.memory_space<vmem>>, vector<8x8xf32>
    %c0_2 = arith.constant 0 : index
    %c0_3 = arith.constant 0 : index
    %4 = vector.load %arg2[%c0_2, %c0_3] : memref<8x128xf32, #tpu.memory_space<vmem>>, vector<8x128xf32>
    %c0_4 = arith.constant 0 : index
    %c0_5 = arith.constant 0 : index
    %5 = vector.load %arg3[%c0_4, %c0_5] : memref<128x8xf32, #tpu.memory_space<vmem>>, vector<128x8xf32>
    %cst = arith.constant dense<0.000000e+00> : vector<8x8xf32>
    %6 = tpu.matmul %4, %5, %cst {dimension_numbers = #tpu.dot_dimension_numbers<[1], [0], [0], [1], [0, 0, 1, 1], [], []>} : vector<8x128xf32>, vector<128x8xf32>, vector<8x8xf32> -> vector<8x8xf32>
    %7 = arith.addf %3, %6 : vector<8x8xf32>
    %c0_6 = arith.constant 0 : index
    %c0_7 = arith.constant 0 : index
    %8 = vector.load %arg6[%c0_6, %c0_7] : memref<8x8xf32, #tpu.memory_space<vmem>>, vector<8x8xf32>
    tpu.vector_store %arg6[%c0_6, %c0_7], %7 {strides = array<i32>} : memref<8x8xf32, #tpu.memory_space<vmem>>, vector<8x8xf32>,
    %c0_i32_8 = arith.constant 0 : i32
    %9 = arith.cmpi eq, %arg1, %c0_i32_8 : i32
    %10 = arith.extui %9 : i1 to i32
    %c0_i32_9 = arith.constant 0 : i32
    %11 = arith.cmpi ne, %10, %c0_i32_9 : i32
    scf.if %11 {
      %c0_10 = arith.constant 0 : index
      %c0_11 = arith.constant 0 : index
      %12 = vector.load %arg6[%c0_10, %c0_11] : memref<8x8xf32, #tpu.memory_space<vmem>>, vector<8x8xf32>
      %cst_12 = arith.constant 1.600000e+01 : f32
      %13 = vector.broadcast %cst_12 : f32 to vector<8x8xf32>
      %14 = arith.mulf %13, %12 : vector<8x8xf32>
      %c0_13 = arith.constant 0 : index
      %c0_14 = arith.constant 0 : index
      %15 = vector.load %arg4[%c0_13, %c0_14] : memref<8x128xf32, #tpu.memory_space<vmem>>, vector<8x128xf32>
      %cst_15 = arith.constant dense<0.000000e+00> : vector<8x128xf32>
      %16 = tpu.matmul %14, %15, %cst_15 {dimension_numbers = #tpu.dot_dimension_numbers<[1], [0], [0], [1], [0, 0, 1, 1], [], []>} : vector<8x8xf32>, vector<8x128xf32>, vector<8x128xf32> -> vector<8x128xf32>
      %c0_16 = arith.constant 0 : index
      %c0_17 = arith.constant 0 : index
      %17 = vector.load %arg5[%c0_16, %c0_17] : memref<8x128xf32, #tpu.memory_space<vmem>>, vector<8x128xf32>
      tpu.vector_store %arg5[%c0_16, %c0_17], %16 {strides = array<i32>} : memref<8x128xf32, #tpu.memory_space<vmem>>, vector<8x128xf32>,
    } else {
    }
    return
  }
  func.func @transform_0(%arg0: i32, %arg1: i32) -> (i32, i32) {
    %c0_i32 = arith.constant 0 : i32
    return %arg0, %arg1 : i32, i32
  }
  func.func @transform_1(%arg0: i32, %arg1: i32) -> (i32, i32) {
    %c0_i32 = arith.constant 0 : i32
    %c0_i32_0 = arith.constant 0 : i32
    return %arg1, %c0_i32 : i32, i32
  }
  func.func @transform_2(%arg0: i32, %arg1: i32) -> (i32, i32) {
    %c0_i32 = arith.constant 0 : i32
    %c0_i32_0 = arith.constant 0 : i32
    %c0_i32_1 = arith.constant 0 : i32
    return %c0_i32, %c0_i32_0 : i32, i32
  }
  func.func @transform_3(%arg0: i32, %arg1: i32) -> (i32, i32) {
    %c0_i32 = arith.constant 0 : i32
    %c0_i32_0 = arith.constant 0 : i32
    return %arg0, %c0_i32 : i32, i32
  }
}

</mosaic_0001>

<llo_original>
// kernel: tpu_custom_call.1
$region0: #{tpu_custom_call.1}
  #allocation0 [shape = 'u32[]', space=smem, size = 0x4, offset = 0x4, fixed_abs, tag = 'smem constant byte address 0x4 - core index']
  #allocation1 [shape = 'u32[72,128]{1,0:T(1,128)}', space=vmem, size = 0x9000, scoped, tag = 'internal scratch']
  #allocation2 [shape = 'f32[8,8]{1,0:T(8,128)}', space=vmem, size = 0x1000, scoped, tag = 'scratch operand']
  %s0 = inlined_call_operand.vmem [shape: f32[16,128], index: 0, kind: input, shape index: {}]
  %s1 = inlined_call_operand.vmem [shape: f32[128,8], index: 1, kind: input, shape index: {}]
  %s2 = inlined_call_operand.vmem [shape: f32[8,128], index: 2, kind: input, shape index: {}]
  %s3 = inlined_call_operand.hbm [shape: f32[16,128], index: 3, kind: output, shape index: {}]
  %s4 = sld [smem:[#allocation0]]
  $region53: #{tpu_custom_call.1} parent=0
    _
  %s6 = ssub.s32 1, %s4
  %s7 = scalar_select 0, %s6, %s4
  $region1: #{tpu_custom_call.1} parent=0
    #allocation3 [shape = 'u8[8192]{0}', space=vmem, size = 0x2000, scoped, tag = 'output window, operand 0']
    #allocation4 [shape = 's32[2]{0}', space=sflag, size = 0x8, scoped, tag = 'scoped memory for tpu_custom_call.1']
    %8 = vsyncpa [#allocation4], 0
    %s9 = scalar_lea.sflag [#allocation4], 1
    %10 = vsyncpa %s9, 0
    loop: start=0, step=1, limit=4
    $region2: #{tpu_custom_call.1} parent=1 // loop_pre_header
      _
    $region3: #{tpu_custom_call.1} parent=1 // loop_header
      %s12 = sphi 0, %s16
      %p13 = scmp.ge.s32.totalorder %s12, 4
      %s19 = sphi 0, %s31
      %s20 = sphi 0, %s27
      %s21 = sphi 0, %s19
      %s22 = sphi 0, %s20
      %s23 = sphi 0, %s21
      %s24 = sphi 0, %s22
      %s36 = sphi 0, %s38
      %s39 = sphi 0, %s36
      %s40 = sphi 0, %s39
      %s56 = sphi 0, %s40
      %s62 = sphi 0, %s64
      %s65 = sphi 0, %s62
      %s66 = sphi 0, %s65
      %s82 = sphi 0, %s66
      %s86 = sphi 0, %s86
      %s88 = sphi 0, %s86
      %s89 = sphi 0, %s88
      %s103 = sphi 0, %s89
      %s109 = sphi 0, %s111
      %s112 = sphi 0, %s109
      %s113 = sphi 0, %s112
      %s129 = sphi 0, %s113
    $region4: #{tpu_custom_call.1} parent=1 // loop_header_branch
      %15 = sbr.rel (%p13) target = $region8
    $region5: #{tpu_custom_call.1} parent=1 // loop_body
      %s17 = ssub.s32 %s12, 1
      %s18 = ssub.s32 %s12, 2
      %s25 = sadd.s32 1, %s20
      %p26 = scmp.ge.s32.totalorder %s25, 1
      %s27 = scalar_select %p26, 0, %s25
      %s28 = sadd.s32 1, %s19
      %s29 = scalar_select %p26, %s28, %s19
      %p30 = scmp.ge.s32.totalorder %s29, 2
      %s31 = scalar_select %p30, 0, %s29
      %s32 = ssub.s32 %s19, %s31
      %s33 = ssub.s32 %s20, %s27
      %s34 = sor.u32 %s32, %s33
      %p35 = scmp.eq.s32.totalorder %s34, 0
      %s37 = sadd.s32 %s36, 1
      %s38 = scalar_select %p35, %s36, %s37
      %p41 = pneg %p35
      %p42 = scmp.eq.s32.totalorder %s12, 1
      %p43 = por %p41, %p42
      %p44 = scmp.ne.s32.totalorder %s36, %s39
      %p45 = scmp.eq.s32.totalorder %s12, 0
      %p46 = por %p44, %p45
      %p47 = scmp.ne.s32.totalorder %s36, %s39
      %p48 = scmp.eq.s32.totalorder %s17, 1
      %p49 = por %p47, %p48
      %p50 = scmp.ne.s32.totalorder %s39, %s40
      %p51 = scmp.eq.s32.totalorder %s17, 0
      %p52 = por %p50, %p51
      %p53 = scmp.ne.s32.totalorder %s39, %s40
      %p54 = scmp.eq.s32.totalorder %s18, 1
      %p55 = por %p53, %p54
      %p57 = scmp.ne.s32.totalorder %s40, %s56
      %p58 = scmp.eq.s32.totalorder %s18, 0
      %p59 = por %p57, %p58
      %s60 = ssub.s32 %s20, %s27
      %p61 = scmp.eq.s32.totalorder %s60, 0
      %s63 = sadd.s32 %s62, 1
      %s64 = scalar_select %p61, %s62, %s63
      %p67 = pneg %p61
      %p68 = scmp.eq.s32.totalorder %s12, 1
      %p69 = por %p67, %p68
      %p70 = scmp.ne.s32.totalorder %s62, %s65
      %p71 = scmp.eq.s32.totalorder %s12, 0
      %p72 = por %p70, %p71
      %p73 = scmp.ne.s32.totalorder %s62, %s65
      %p74 = scmp.eq.s32.totalorder %s17, 1
      %p75 = por %p73, %p74
      %p76 = scmp.ne.s32.totalorder %s65, %s66
      %p77 = scmp.eq.s32.totalorder %s17, 0
      %p78 = por %p76, %p77
      %p79 = scmp.ne.s32.totalorder %s65, %s66
      %p80 = scmp.eq.s32.totalorder %s18, 1
      %p81 = por %p79, %p80
      %p83 = scmp.ne.s32.totalorder %s66, %s82
      %p84 = scmp.eq.s32.totalorder %s18, 0
      %p85 = por %p83, %p84
      %s87 = sadd.s32 %s86, 1
      %p90 = scmp.eq.s32.totalorder %s12, 1
      %p91 = scmp.ne.s32.totalorder %s86, %s88
      %p92 = scmp.eq.s32.totalorder %s12, 0
      %p93 = por %p91, %p92
      %p94 = scmp.ne.s32.totalorder %s86, %s88
      %p95 = scmp.eq.s32.totalorder %s17, 1
      %p96 = por %p94, %p95
      %p97 = scmp.ne.s32.totalorder %s88, %s89
      %p98 = scmp.eq.s32.totalorder %s17, 0
      %p99 = por %p97, %p98
      %p100 = scmp.ne.s32.totalorder %s88, %s89
      %p101 = scmp.eq.s32.totalorder %s18, 1
      %p102 = por %p100, %p101
      %p104 = scmp.ne.s32.totalorder %s89, %s103
      %p105 = scmp.eq.s32.totalorder %s18, 0
      %p106 = por %p104, %p105
      %s107 = ssub.s32 %s19, %s31
      %p108 = scmp.eq.s32.totalorder %s107, 0
      %s110 = sadd.s32 %s109, 1
      %s111 = scalar_select %p108, %s109, %s110
      %p114 = pneg %p108
      %p115 = scmp.eq.s32.totalorder %s12, 1
      %p116 = por %p114, %p115
      %p117 = scmp.ne.s32.totalorder %s109, %s112
      %p118 = scmp.eq.s32.totalorder %s12, 0
      %p119 = por %p117, %p118
      %p120 = scmp.ne.s32.totalorder %s109, %s112
      %p121 = scmp.eq.s32.totalorder %s17, 1
      %p122 = por %p120, %p121
      %p123 = scmp.ne.s32.totalorder %s112, %s113
      %p124 = scmp.eq.s32.totalorder %s17, 0
      %p125 = por %p123, %p124
      %p126 = scmp.ne.s32.totalorder %s112, %s113
      %p127 = scmp.eq.s32.totalorder %s18, 1
      %p128 = por %p126, %p127
      %p130 = scmp.ne.s32.totalorder %s113, %s129
      %p131 = scmp.eq.s32.totalorder %s18, 0
      %p132 = por %p130, %p131
      %p133 = scmp.le.s32.totalorder 1, %s12
      %p134 = scmp.lt.s32.totalorder %s12, 3
      %p135 = pnand %p133, %p134
      %p136 = pneg %p135
      // Predicated region
      $region9: #{tpu_custom_call.1} parent=5 // pred_check
        _
      $region10: #{tpu_custom_call.1} parent=5 // pred_check_branch
        %138 = sbr.rel (%p135) target = $region12
      $region11: #{tpu_custom_call.1} parent=5 // pred_region
        %s139 = ssub.s32 %s12, 1
        // Predicated region
        $region13: #{tpu_custom_call.1} parent=11 // pred_check
          %p140 = pneg %p78
        $region14: #{tpu_custom_call.1} parent=11 // pred_check_branch
          %142 = sbr.rel (%p140) target = $region16
        $region15: #{tpu_custom_call.1} parent=11 // pred_region
          %s143 = smul.u32 16, %s22
          %p144 = scmp.lt.s32.totalorder %s143, 15
          %s145 = scalar_select %p144, %s143, 15
          %s146 = smul.addr %s145, 8
          %s147 = scalar_lea.vmem %s1, %s146
          %s148 = smul.u32 16, %s22
        $region16: #{tpu_custom_call.1} parent=11 // pred_fallthru
          _
        // Predicated region
        $region17: #{tpu_custom_call.1} parent=11 // pred_check
          %p149 = pneg %p99
        $region18: #{tpu_custom_call.1} parent=11 // pred_check_branch
          %151 = sbr.rel (%p149) target = $region20
        $region19: #{tpu_custom_call.1} parent=11 // pred_region
          _
        $region20: #{tpu_custom_call.1} parent=11 // pred_fallthru
          _
      $region12: #{tpu_custom_call.1} parent=5 // pred_fallthru
        _
      %p152 = scmp.lt.s32.totalorder %s12, 2
      // Predicated region
      $region21: #{tpu_custom_call.1} parent=5 // pred_check
        %p153 = pneg %p152
      $region22: #{tpu_custom_call.1} parent=5 // pred_check_branch
        %155 = sbr.rel (%p153) target = $region24
      $region23: #{tpu_custom_call.1} parent=5 // pred_region
        // Predicated region
        $region25: #{tpu_custom_call.1} parent=23 // pred_check
          %p156 = pneg %p46
        $region26: #{tpu_custom_call.1} parent=23 // pred_check_branch
          %158 = sbr.rel (%p156) target = $region28
        $region27: #{tpu_custom_call.1} parent=23 // pred_region
          %p159 = scmp.lt.s32.totalorder %s19, 1
          %s160 = scalar_select %p159, %s19, 1
          %p161 = scmp.lt.s32.totalorder %s20, 0
          %s162 = scalar_select %p161, %s20, 0
          %s163 = sadd.s32 %s162, %s160
          %s164 = smul.addr %s163, 8
          %s165 = scalar_lea.vmem %s0, %s164
        $region28: #{tpu_custom_call.1} parent=23 // pred_fallthru
          _
      $region24: #{tpu_custom_call.1} parent=5 // pred_fallthru
        _
      %p166 = scmp.le.s32.totalorder 1, %s12
      %p167 = scmp.lt.s32.totalorder %s12, 3
      %p168 = pnand %p166, %p167
      %p169 = pneg %p168
      // Predicated region
      $region29: #{tpu_custom_call.1} parent=5 // pred_check
        _
      $region30: #{tpu_custom_call.1} parent=5 // pred_check_branch
        %171 = sbr.rel (%p168) target = $region32
      $region31: #{tpu_custom_call.1} parent=5 // pred_region
        %s172 = ssub.s32 %s12, 1
        %p173 = scmp.lt.s32.totalorder %s21, 1
        %s174 = scalar_select %p173, %s21, 1
        %p175 = scmp.lt.s32.totalorder %s22, 0
        %s176 = scalar_select %p175, %s22, 0
        %s177 = sadd.s32 %s176, %s174
        %s178 = smul.addr %s177, 8
        %s179 = scalar_lea.vmem %s0, %s178
        %p180 = pneg %p52
        %p181 = pneg %p49
        %s182 = smul.u32 16, %s22
        %p183 = scmp.lt.s32.totalorder %s182, 15
        %s184 = scalar_select %p183, %s182, 15
        %s185 = smul.addr %s184, 8
        %s186 = scalar_lea.vmem %s1, %s185
        %p187 = pneg %p78
        %p188 = pneg %p75
        %p189 = pneg %p99
        %p190 = pneg %p96
        %p191 = pneg %p125
        %p192 = pneg %p122
        %s193 = sand.u32 %s112, 1
        %s194 = scalar_lea.sflag [#allocation4], %s193
        %s195 = sand.u32 %s112, 1
        %s196 = smul.addr %s195, 8
        %s197 = scalar_lea.vmem [#allocation3], %s196
        %p198 = scmp.lt.s32.totalorder %s21, 1
        %s199 = scalar_select %p198, %s21, 1
        %p200 = scmp.lt.s32.totalorder %s22, 0
        %s201 = scalar_select %p200, %s22, 0
        %s202 = sadd.s32 %s201, %s199
        %s203 = smul.addr %s202, 8
        %s204 = scalar_lea.vmem %s0, %s203
        %s205 = smul.u32 16, %s22
        %p206 = scmp.lt.s32.totalorder %s205, 15
        %s207 = scalar_select %p206, %s205, 15
        %s208 = smul.addr %s207, 8
        %s209 = scalar_lea.vmem %s1, %s208
        %s210 = smul.u32 16, %s22
        %p211 = scmp.eq.s32.totalorder %s22, 0
        // Predicated region
        $region33: #{tpu_custom_call.1} parent=31 // pred_check
          %p212 = pneg %p211
        $region34: #{tpu_custom_call.1} parent=31 // pred_check_branch
          %214 = sbr.rel (%p212) target = $region36
        $region35: #{tpu_custom_call.1} parent=31 // pred_region
          %vm215 = vcmask 64512
          %216 = vst.msk [vmem:[#allocation2] sm:$0xff] %vm215, 0.0
        $region36: #{tpu_custom_call.1} parent=31 // pred_fallthru
          _
        %v217 = vld [vmem:[#allocation2] sm:$0xff]
        %v218 = vld [vmem:[%s204] sm:$0xff]
        %v219 = vld [vmem:[%s209] sm:$0xff]
        %v220 = vld [vmem:[%s209 + $0x8] sm:$0xff]
        %v221 = vld [vmem:[%s209 + $0x10] sm:$0xff]
        %v222 = vld [vmem:[%s209 + $0x18] sm:$0xff]
        %v223 = vld [vmem:[%s209 + $0x20] sm:$0xff]
        %v224 = vld [vmem:[%s209 + $0x28] sm:$0xff]
        %v225 = vld [vmem:[%s209 + $0x30] sm:$0xff]
        %v226 = vld [vmem:[%s209 + $0x38] sm:$0xff]
        %v227 = vld [vmem:[%s209 + $0x40] sm:$0xff]
        %v228 = vld [vmem:[%s209 + $0x48] sm:$0xff]
        %v229 = vld [vmem:[%s209 + $0x50] sm:$0xff]
        %v230 = vld [vmem:[%s209 + $0x58] sm:$0xff]
        %v231 = vld [vmem:[%s209 + $0x60] sm:$0xff]
        %v232 = vld [vmem:[%s209 + $0x68] sm:$0xff]
        %v233 = vld [vmem:[%s209 + $0x70] sm:$0xff]
        %v234 = vld [vmem:[%s209 + $0x78] sm:$0xff]
        %235 = vmatpush.msra.mxu0 %v234
        %236 = vmatpush.msra.mxu0 %v233
        %237 = vmatpush.msra.mxu0 %v232
        %238 = vmatpush.msra.mxu0 %v231
        %239 = vmatpush.msra.mxu0 %v230
        %240 = vmatpush.msra.mxu0 %v229
        %241 = vmatpush.msra.mxu0 %v228
        %242 = vmatpush.msra.mxu0 %v227
        %243 = vmatpush.msra.mxu0 %v226
        %244 = vmatpush.msra.mxu0 %v225
        %245 = vmatpush.msra.mxu0 %v224
        %246 = vmatpush.msra.mxu0 %v223
        %247 = vmatpush.msra.mxu0 %v222
        %248 = vmatpush.msra.mxu0 %v221
        %249 = vmatpush.msra.mxu0 %v220
        %250 = vmatpush.msra.mxu0 %v219
        %251 = vmatmul.f32.gmra.mxu0 %v218
        %v252 = vpop.f32.mrf.mxu0
        %v253 = vadd.f32 0.0, %v252
        %254 = vdwg.mxu0
        %v255 = vadd.f32 %v217, %v253
        %vm256 = vcmask 64512
        %257 = vst.msk [vmem:[#allocation2] sm:$0xff] %vm256, %v255
        // Predicated region
        $region37: #{tpu_custom_call.1} parent=31 // pred_check
          %p258 = pneg %p211
        $region38: #{tpu_custom_call.1} parent=31 // pred_check_branch
          %260 = sbr.rel (%p258) target = $region40
        $region39: #{tpu_custom_call.1} parent=31 // pred_region
          %v261 = vld [vmem:[#allocation2] sm:$0xff]
          %v262 = vmul.f32 %v261, 16.0
          %v263 = vld [vmem:[%s2] sm:$0xff]
          %v265 = vsel %vm256, %v262, 0
          %267 = vmatpush.msra.mxu0 0.0
          %268 = vmatpush.msra.mxu0 0.0
          %269 = vmatpush.msra.mxu0 0.0
          %270 = vmatpush.msra.mxu0 0.0
          %271 = vmatpush.msra.mxu0 0.0
          %272 = vmatpush.msra.mxu0 0.0
          %273 = vmatpush.msra.mxu0 0.0
          %274 = vmatpush.msra.mxu0 0.0
          %275 = vmatpush.msra.mxu0 0.0
          %276 = vmatpush.msra.mxu0 0.0
          %277 = vmatpush.msra.mxu0 0.0
          %278 = vmatpush.msra.mxu0 0.0
          %279 = vmatpush.msra.mxu0 0.0
          %280 = vmatpush.msra.mxu0 0.0
          %281 = vmatpush.msra.mxu0 0.0
          %282 = vmatpush.msra.mxu0 %v263
          %283 = vmatmul.f32.gmra.mxu0 %v265
          %v284 = vpop.f32.mrf.mxu0
          %v285 = vadd.f32 0.0, %v284
          %286 = vdwg.mxu0
          %287 = vst [vmem:[%s197] sm:$0xff] %v285
        $region40: #{tpu_custom_call.1} parent=31 // pred_fallthru
          _
        %s288 = sand.u32 %s112, 1
        %s289 = scalar_lea.sflag [#allocation4], %s288
        %s290 = sand.u32 %s112, 1
        %s291 = smul.addr %s290, 8
        %s292 = scalar_lea.vmem [#allocation3], %s291
        // Predicated region
        $region41: #{tpu_custom_call.1} parent=31 // pred_check
          %p293 = pneg %p122
        $region42: #{tpu_custom_call.1} parent=31 // pred_check_branch
          %295 = sbr.rel (%p293) target = $region44
        $region43: #{tpu_custom_call.1} parent=31 // pred_region
          %297 = vsyncadd %s289, 0
          %s298 = smul.addr %s21, 8
          %s299 = scalar_lea.hbm %s3, %s298
          %s301 = sshll.u32 %s292, 4
          %s302 = int_to_ptr.vmem [resolvable:$true] %s301
          %s303 = sshll.u32 %s299, 4
          %s304 = int_to_ptr.hbm [resolvable:$true] %s303
          %306 = dma.vmem_to_hbm [thread:$0]  %s302, 128, %s304, %s289
        $region44: #{tpu_custom_call.1} parent=31 // pred_fallthru
          _
      $region32: #{tpu_custom_call.1} parent=5 // pred_fallthru
        _
      %p307 = scmp.le.s32.totalorder 2, %s12
      // Predicated region
      $region45: #{tpu_custom_call.1} parent=5 // pred_check
        %p308 = pneg %p307
      $region46: #{tpu_custom_call.1} parent=5 // pred_check_branch
        %310 = sbr.rel (%p308) target = $region48
      $region47: #{tpu_custom_call.1} parent=5 // pred_region
        %s311 = ssub.s32 %s12, 2
        // Predicated region
        $region49: #{tpu_custom_call.1} parent=47 // pred_check
          %p312 = pneg %p128
        $region50: #{tpu_custom_call.1} parent=47 // pred_check_branch
          %314 = sbr.rel (%p312) target = $region52
        $region51: #{tpu_custom_call.1} parent=47 // pred_region
          %s315 = sand.u32 %s113, 1
          %s316 = scalar_lea.sflag [#allocation4], %s315
          %s317 = sand.u32 %s113, 1
          %s318 = smul.addr %s317, 8
          %s319 = scalar_lea.vmem [#allocation3], %s318
          %321 = dma.done %s316, 128
        $region52: #{tpu_custom_call.1} parent=47 // pred_fallthru
          _
      $region48: #{tpu_custom_call.1} parent=5 // pred_fallthru
        _
    $region6: #{tpu_custom_call.1} parent=1 // loop_footer
      %s16 = sadd.s32 1, %s12
    $region7: #{tpu_custom_call.1} parent=1 // loop_footer_branch
      %11 = sbr.rel target = $region3
    $region8: #{tpu_custom_call.1} parent=1 // loop_exit
      _
    %322 = vsyncpa [#allocation4], 1
    %s323 = scalar_lea.sflag [#allocation4], 1
    %324 = vsyncpa %s323, 1

</llo_original>
